<compile_context>
chip_gen: v6e
topology: v6e:2x2x1
jax: 0.10.0
libtpu: 0.0.40
codegen_flags: <defaults>
</compile_context>

<pallas_src>
import jax
import jax.numpy as jnp
import numpy as np
from jax.experimental import pallas as pl
from jax.experimental.pallas import tpu as pltpu

# ---------------- problem sizes (small, consistent with the module) ----------------
B = 2          # batch
S = 8          # source sequence length (encoder outputs)
E = 16         # emb_dim
H = 32         # hid_dim   (4*H == 128 lanes -> fused GRU gate layout fits one vreg row)
V = 64         # out_dim (vocab)
NL = 2         # n_layers

LANES = 128    # lane-pad everything to 128 for dense loads/stores
OUT_ROWS = 8   # packed per-step output slab rows (pred + h0_new + h1_new + padding)

# ----- row offsets inside the packed weight slab --------------------------------------
R_EMB = 0                         # [V, E]        embedding table (padding_idx row 0 is zero)
R_WA = R_EMB + V                  # [3H, H]       attention Linear, rows = [enc part ; hid part]
R_G0 = R_WA + 3 * H               # [E+3H, 128]   fused GRU L0 (W_ih over W_hh, lanes r|z|gx_n|gh_n)
R_G1 = R_G0 + (E + 3 * H)         # [2H, 128]     fused GRU L1
R_FC = R_G1 + 2 * H               # [3H+E, V]     fc_out on cat(output, weighted, embedded)
R_BIAS = R_FC + (3 * H + E)       # 8 bias rows: ba, va, b_g0, b_g1, bfc, pad
R_TOTAL = R_BIAS + 8              # 456 rows -> slab is [456, 128] f32 (~228 KiB)


# ----------------------------- fused Pallas kernel ------------------------------------
def decoder_kernel(tok_ref, hid0_ref, enc_ref, w_ref, out_ref, hstate_ref):
    t = pl.program_id(0)

    # Initialize the resident hidden-state scratch from the input on the first step.
    @pl.when(t == 0)
    def _():
        hstate_ref[...] = hid0_ref[...]

    h0 = hstate_ref[0:B, :]                    # [B, H]  GRU layer-0 state
    h1 = hstate_ref[B:2 * B, :]                # [B, H]  GRU layer-1 / top state
    enc = enc_ref[...]                         # [B*S, 2H]

    # ---------------- embedding: in-kernel gather via one-hot matmul -----------------
    # (dropout p=0.3 on the embedding is identity in eval mode)
    row = jax.lax.broadcasted_iota(jnp.int32, (B, V), 0)
    col = jax.lax.broadcasted_iota(jnp.int32, (B, V), 1)
    tok_mat = jnp.zeros((B, V), jnp.int32)
    for b in range(B):                                   # B=2, unrolled at trace time
        tok_mat = jnp.where(row == b, tok_ref[t, b], tok_mat)
    onehot = (col == tok_mat).astype(jnp.float32)        # [B, V]
    emb_block = w_ref[R_EMB:R_EMB + V, :]                 # [V, 128] (lanes >= E are 0)
    emb = jnp.dot(onehot, emb_block,
                  preferred_element_type=jnp.float32)[:, :E]          # [B, E]

    # ---------------- attention: a = softmax_s( v . tanh(W[enc ; h_top] + b) ) -------
    h1_rep = jnp.broadcast_to(h1[:, None, :], (B, S, H)).reshape(B * S, H)   # [B*S, H]
    att_in = jnp.concatenate([enc, h1_rep], axis=1)                          # [B*S, 3H]
    wa = w_ref[R_WA:R_WA + 3 * H, :]                                          # [3H, 128]
    ba = w_ref[R_BIAS + 0:R_BIAS + 1, :]                                      # [1, 128]
    va = w_ref[R_BIAS + 1:R_BIAS + 2, :]                                      # [1, 128]
    energy = jnp.tanh(jnp.dot(att_in, wa,
                              preferred_element_type=jnp.float32) + ba)       # [B*S, 128]
    # scores via VPU mul + lane reduce (avoids a 1-lane-output MXU matmul)
    scores = jnp.sum(energy * va, axis=1, keepdims=True)                      # [B*S, 1]

    sc = scores.reshape(B, S, 1)                                              # [B, S, 1]
    sc = sc - jnp.max(sc, axis=1, keepdims=True)
    ex = jnp.exp(sc)
    denom = jnp.sum(ex, axis=1, keepdims=True)                                # [B, 1, 1]
    enc3 = enc.reshape(B, S, 2 * H)                                           # free split
    # fold the softmax normalization after the weighted sum ('a' never materialized)
    weighted = (jnp.sum(ex * enc3, axis=1)
                * pl.reciprocal(denom[:, 0, :], approx=False))                # [B, 2H]

    # ---------------- GRU (2 layers, 1 time step, PyTorch gate order r, z, n) --------
    # Fused layout: one matmul per layer on [x | h] against a [r|z|gx_n|gh_n] weight
    # block; r/z biases are pre-summed host-side, n biases split by x/h lane group.
    def gru_layer(x, h, w_row0, n_in, bias_row):
        w = w_ref[w_row0:w_row0 + n_in + H, :]                                # first use
        bg = w_ref[bias_row:bias_row + 1, :]
        g = jnp.dot(jnp.concatenate([x, h], axis=1), w,
                    preferred_element_type=jnp.float32) + bg                  # [B, 128]
        r = jax.nn.sigmoid(g[:, 0:H])
        z = jax.nn.sigmoid(g[:, H:2 * H])
        n = jnp.tanh(g[:, 2 * H:3 * H] + r * g[:, 3 * H:4 * H])
        return (1.0 - z) * n + z * h

    # layer 0: GRU input = cat(embedded, weighted)
    x0 = jnp.concatenate([emb, weighted], axis=1)                             # [B, E+2H]
    h0_new = gru_layer(x0, h0, R_G0, E + 2 * H, R_BIAS + 2)                   # [B, H]
    # layer 1: input = layer-0 output (inter-layer dropout is identity in eval mode)
    h1_new = gru_layer(h0_new, h1, R_G1, H, R_BIAS + 3)                       # [B, H]

    # ---------------- fc_out on cat(output, weighted, embedded)  (one fused matmul) --
    w_fc = w_ref[R_FC:R_FC + 3 * H + E, :]                                    # [3H+E, 128]
    bfc = w_ref[R_BIAS + 4:R_BIAS + 5, :]
    xf = jnp.concatenate([h1_new, weighted, emb], axis=1)                     # [B, 3H+E]
    pred = jnp.dot(xf, w_fc, preferred_element_type=jnp.float32) + bfc        # [B, 128]

    # ---------------- carry hidden state; single lane-dense per-step output slab -----
    hstate_ref[...] = jnp.concatenate([h0_new, h1_new], axis=0)               # [NL*B, H]

    pad_h = jnp.zeros((B, LANES - H), jnp.float32)
    out_ref[0] = jnp.concatenate(
        [pred,
         jnp.concatenate([h0_new, pad_h], axis=1),
         jnp.concatenate([h1_new, pad_h], axis=1),
         jnp.zeros((OUT_ROWS - 3 * B, LANES), jnp.float32)],
        axis=0)


# --------------------------------- wrappers -------------------------------------------
def _decode_impl(token_seq, hidden, encoder_outputs, w_slab):
    """Fused T-step (teacher-forced) decode: one pallas_call, grid over time steps."""
    T = token_seq.shape[0]
    hid2d = hidden.reshape(NL * B, H)                  # [NL*B, H]
    enc2d = encoder_outputs.reshape(B * S, 2 * H)      # [B*S, 2H]

    out = pl.pallas_call(
        decoder_kernel,
        out_shape=jax.ShapeDtypeStruct((T, OUT_ROWS, LANES), jnp.float32),
        grid_spec=pltpu.PrefetchScalarGridSpec(
            num_scalar_prefetch=1,                     # token ids -> SMEM
            grid=(T,),
            in_specs=[
                # constant block indices -> DMA'd once, resident in VMEM for all steps
                pl.BlockSpec((NL * B, H), lambda t, tok: (0, 0)),
                pl.BlockSpec((B * S, 2 * H), lambda t, tok: (0, 0)),
                pl.BlockSpec((R_TOTAL, LANES), lambda t, tok: (0, 0)),
            ],
            out_specs=pl.BlockSpec((1, OUT_ROWS, LANES), lambda t, tok: (t, 0, 0)),
            scratch_shapes=[pltpu.VMEM((NL * B, H), jnp.float32)],   # hidden-state carry
        ),
        compiler_params=pltpu.CompilerParams(
            dimension_semantics=("arbitrary",)),       # sequential: state carried step->step
    )(token_seq.astype(jnp.int32), hid2d, enc2d, w_slab)

    preds = out[:, :B, :V]                             # [T, B, V]
    hid_new = out[T - 1, B:3 * B, :H].reshape(NL, B, H)
    return preds, hid_new


decoder_decode = jax.jit(_decode_impl)


def _single_step_impl(token_ids, hidden, encoder_outputs, w_slab):
    """Matches the original Decoder.forward (one token step)."""
    preds, hid_new = _decode_impl(token_ids[None, :], hidden, encoder_outputs, w_slab)
    return preds[0], hid_new


decoder_forward = jax.jit(_single_step_impl)


# ------------------------ deterministic parameter init --------------------------------
def init_params(key):
    ks = jax.random.split(key, 14)
    s = 0.1

    emb_table = s * jax.random.normal(ks[0], (V, E), jnp.float32)
    emb_table = emb_table.at[0].set(0.0)                            # padding_idx = 0

    # attention: Linear(3H -> H) on cat(hidden, enc); v: Linear(H -> 1) stored as a row
    wa = s * jax.random.normal(ks[1], (3 * H, H), jnp.float32)      # [in, out]
    ba = s * jax.random.normal(ks[2], (1, H), jnp.float32)
    va = s * jax.random.normal(ks[3], (1, H), jnp.float32)

    # GRU layer 0: input = cat(emb, weighted) -> size E + 2H
    w_ih0 = s * jax.random.normal(ks[4], (E + 2 * H, 3 * H), jnp.float32)
    w_hh0 = s * jax.random.normal(ks[5], (H, 3 * H), jnp.float32)
    bih0 = s * jax.random.normal(ks[6], (1, 3 * H), jnp.float32)
    bhh0 = s * jax.random.normal(ks[7], (1, 3 * H), jnp.float32)

    # GRU layer 1: input size = H
    w_ih1 = s * jax.random.normal(ks[8], (H, 3 * H), jnp.float32)
    w_hh1 = s * jax.random.normal(ks[9], (H, 3 * H), jnp.float32)
    bih1 = s * jax.random.normal(ks[10], (1, 3 * H), jnp.float32)
    bhh1 = s * jax.random.normal(ks[11], (1, 3 * H), jnp.float32)

    # fc_out: Linear(3H + E -> V) on cat(output, weighted, embedded)
    w_fc = s * jax.random.normal(ks[12], (3 * H + E, V), jnp.float32)
    bfc = s * jax.random.normal(ks[13], (1, V), jnp.float32)

    return dict(emb_table=emb_table, wa=wa, ba=ba, va=va,
                w_ih0=w_ih0, w_hh0=w_hh0, bih0=bih0, bhh0=bhh0,
                w_ih1=w_ih1, w_hh1=w_hh1, bih1=bih1, bhh1=bhh1,
                w_fc=w_fc, bfc=bfc)


def pack_weights(p):
    """Pack embedding + all weights/biases into one zero-padded [R_TOTAL, 128] f32 slab.

    NOTE: when loading real PyTorch weights, torch Linear/GRU weights are [out, in]
    and must be transposed first (init_params already produces [in, out]).
    # TODO(synk): for v5e, store the slab in bf16 (halves the one-time DMA) and cast
    # activations at each dot; requires looser test tolerances.
    """
    slab = np.zeros((R_TOTAL, LANES), np.float32)

    # embedding table
    slab[R_EMB:R_EMB + V, :E] = np.asarray(p["emb_table"], np.float32)

    # attention: rows = [enc part (2H) ; hid part (H)], lanes 0:H
    slab[R_WA:R_WA + 2 * H, :H] = np.asarray(p["wa"][H:], np.float32)
    slab[R_WA + 2 * H:R_WA + 3 * H, :H] = np.asarray(p["wa"][:H], np.float32)

    # fused GRU blocks: rows = [W_ih ; W_hh], lanes = [r | z | gx_n | gh_n]
    def pack_gru(row0, wih, whh, n_in):
        wih = np.asarray(wih, np.float32)
        whh = np.asarray(whh, np.float32)
        slab[row0:row0 + n_in, 0:H] = wih[:, 0:H]                 # r (ih part)
        slab[row0 + n_in:row0 + n_in + H, 0:H] = whh[:, 0:H]      # r (hh part)
        slab[row0:row0 + n_in, H:2 * H] = wih[:, H:2 * H]         # z (ih part)
        slab[row0 + n_in:row0 + n_in + H, H:2 * H] = whh[:, H:2 * H]
        slab[row0:row0 + n_in, 2 * H:3 * H] = wih[:, 2 * H:3 * H]          # gx_n
        slab[row0 + n_in:row0 + n_in + H, 3 * H:4 * H] = whh[:, 2 * H:3 * H]  # gh_n

    pack_gru(R_G0, p["w_ih0"], p["w_hh0"], E + 2 * H)
    pack_gru(R_G1, p["w_ih1"], p["w_hh1"], H)

    slab[R_FC:R_FC + 3 * H + E, :V] = np.asarray(p["w_fc"], np.float32)

    # bias rows
    slab[R_BIAS + 0, :H] = np.asarray(p["ba"], np.float32)[0]
    slab[R_BIAS + 1, :H] = np.asarray(p["va"], np.float32)[0]

    def pack_gru_bias(row, bih, bhh):
        bih = np.asarray(bih, np.float32)[0]
        bhh = np.asarray(bhh, np.float32)[0]
        slab[row, 0:H] = bih[0:H] + bhh[0:H]                      # r: pre-summed
        slab[row, H:2 * H] = bih[H:2 * H] + bhh[H:2 * H]          # z: pre-summed
        slab[row, 2 * H:3 * H] = bih[2 * H:3 * H]                 # gx_n bias
        slab[row, 3 * H:4 * H] = bhh[2 * H:3 * H]                 # gh_n bias

    pack_gru_bias(R_BIAS + 2, p["bih0"], p["bhh0"])
    pack_gru_bias(R_BIAS + 3, p["bih1"], p["bhh1"])
    slab[R_BIAS + 4, :V] = np.asarray(p["bfc"], np.float32)[0]
    return jnp.asarray(slab)


# ------------------------------ pure-JAX reference -------------------------------------
def decoder_reference(token_ids, hidden, enc, p):
    emb = p["emb_table"][token_ids]
    h0, h1 = hidden[0], hidden[1]
    energy = jnp.tanh(jnp.einsum("bk,kh->bh", h1, p["wa"][:H])[:, None, :]
                      + jnp.einsum("bsk,kh->bsh", enc, p["wa"][H:]) + p["ba"])
    scores = jnp.einsum("bsh,h->bs", energy, p["va"][0])
    a = jax.nn.softmax(scores, axis=1)
    weighted = jnp.einsum("bs,bsk->bk", a, enc)

    def gru(x, h, wih, whh, bih, bhh):
        gx = x @ wih + bih
        gh = h @ whh + bhh
        r = jax.nn.sigmoid(gx[:, :H] + gh[:, :H])
        z = jax.nn.sigmoid(gx[:, H:2 * H] + gh[:, H:2 * H])
        n = jnp.tanh(gx[:, 2 * H:] + r * gh[:, 2 * H:])
        return (1 - z) * n + z * h

    x0 = jnp.concatenate([emb, weighted], axis=1)
    h0n = gru(x0, h0, p["w_ih0"], p["w_hh0"], p["bih0"], p["bhh0"])
    h1n = gru(h0n, h1, p["w_ih1"], p["w_hh1"], p["bih1"], p["bhh1"])
    xf = jnp.concatenate([h1n, weighted, emb], axis=1)
    pred = xf @ p["w_fc"] + p["bfc"]
    return pred, jnp.stack([h0n, h1n], axis=0)


if __name__ == "__main__":
    key = jax.random.PRNGKey(0)
    kp, k1, k2, k3 = jax.random.split(key, 4)

    params = init_params(kp)
    w_slab = pack_weights(params)

    T = 6
    token_seq = jax.random.randint(k1, (T, B), 0, V, dtype=jnp.int32)          # [T, B]
    hidden = 0.1 * jax.random.normal(k2, (NL, B, H), jnp.float32)              # [NL, B, H]
    encoder_outputs = 0.1 * jax.random.normal(k3, (B, S, 2 * H), jnp.float32)  # [B, S, 2H]

    # ---- fused multi-step decode (the performance path) ----
    preds, hid_final = decoder_decode(token_seq, hidden, encoder_outputs, w_slab)
    jax.block_until_ready((preds, hid_final))

    # reference: loop the single-step reference, carrying the hidden state
    h_ref = hidden
    refs = []
    for t in range(T):
        p_t, h_ref = decoder_reference(token_seq[t], h_ref, encoder_outputs, params)
        refs.append(p_t)
    preds_ref = jnp.stack(refs, axis=0)

    np.testing.assert_allclose(np.asarray(preds), np.asarray(preds_ref),
                               rtol=5e-4, atol=1e-5)
    np.testing.assert_allclose(np.asarray(hid_final), np.asarray(h_ref),
                               rtol=5e-4, atol=1e-5)

    # ---- single-step path (original Decoder.forward semantics) ----
    pred1, hid1 = decoder_forward(token_seq[0], hidden, encoder_outputs, w_slab)
    jax.block_until_ready((pred1, hid1))
    pred1_ref, hid1_ref = decoder_reference(token_seq[0], hidden, encoder_outputs, params)
    np.testing.assert_allclose(np.asarray(pred1), np.asarray(pred1_ref),
                               rtol=5e-4, atol=1e-5)
    np.testing.assert_allclose(np.asarray(hid1), np.asarray(hid1_ref),
                               rtol=5e-4, atol=1e-5)

    print("KERNEL_OK")
</pallas_src>

<mosaic_0001>
module attributes {stable_mosaic.version = 11 : i64} {
  func.func @decoder_kernel(%arg0: i32, %arg1: memref<6x2xi32, #tpu.memory_space<smem>>, %arg2: memref<4x32xf32, #tpu.memory_space<vmem>>, %arg3: memref<16x64xf32, #tpu.memory_space<vmem>>, %arg4: memref<456x128xf32, #tpu.memory_space<vmem>>, %arg5: memref<1x8x128xf32, #tpu.memory_space<vmem>>, %arg6: memref<4x32xf32, #tpu.memory_space<vmem>>) attributes {dimension_semantics = [#tpu.dimension_semantics<arbitrary>], iteration_bounds = array<i64: 6>, scalar_prefetch = 1 : i64, scratch_operands = 1 : i64, tpu.core_type = #tpu.core_type<tc>, window_params = [{pipeline_mode = #tpu.pipeline_mode<synchronous>, transform_indices = @transform_0, window_bounds = array<i64: 4, 32>}, {pipeline_mode = #tpu.pipeline_mode<synchronous>, transform_indices = @transform_1, window_bounds = array<i64: 16, 64>}, {pipeline_mode = #tpu.pipeline_mode<synchronous>, transform_indices = @transform_2, window_bounds = array<i64: 456, 128>}, {transform_indices = @transform_3, window_bounds = array<i64: 1, 8, 128>}]} {
    %c0_i32 = arith.constant 0 : i32
    %0 = arith.cmpi eq, %arg0, %c0_i32 : i32
    %1 = arith.extui %0 : i1 to i32
    %c0_i32_0 = arith.constant 0 : i32
    %2 = arith.cmpi ne, %1, %c0_i32_0 : i32
    scf.if %2 {
      %c0_40 = arith.constant 0 : index
      %c0_41 = arith.constant 0 : index
      %132 = vector.load %arg2[%c0_40, %c0_41] : memref<4x32xf32, #tpu.memory_space<vmem>>, vector<4x32xf32>
      %c0_42 = arith.constant 0 : index
      %c0_43 = arith.constant 0 : index
      %133 = vector.load %arg6[%c0_42, %c0_43] : memref<4x32xf32, #tpu.memory_space<vmem>>, vector<4x32xf32>
      tpu.vector_store %arg6[%c0_42, %c0_43], %132 {strides = array<i32>} : memref<4x32xf32, #tpu.memory_space<vmem>>, vector<4x32xf32>,
    } else {
    }
    %c0 = arith.constant 0 : index
    %c0_1 = arith.constant 0 : index
    %3 = vector.load %arg6[%c0, %c0_1] : memref<4x32xf32, #tpu.memory_space<vmem>>, vector<2x32xf32>
    %c2 = arith.constant 2 : index
    %c0_2 = arith.constant 0 : index
    %4 = vector.load %arg6[%c2, %c0_2] : memref<4x32xf32, #tpu.memory_space<vmem>>, vector<2x32xf32>
    %c0_3 = arith.constant 0 : index
    %c0_4 = arith.constant 0 : index
    %5 = vector.load %arg3[%c0_3, %c0_4] : memref<16x64xf32, #tpu.memory_space<vmem>>, vector<16x64xf32>
    %6 = tpu.iota {dimensions = array<i32: 0>} : vector<2x64xi32>
    %7 = tpu.iota {dimensions = array<i32: 1>} : vector<2x64xi32>
    %c0_i32_5 = arith.constant 0 : i32
    %8 = vector.broadcast %c0_i32_5 : i32 to vector<2x64xi32>
    %c0_i32_6 = arith.constant 0 : i32
    %9 = vector.broadcast %c0_i32_6 : i32 to vector<2x64xi32>
    %10 = arith.cmpi eq, %6, %9 : vector<2x64xi32>
    %11 = arith.index_cast %arg0 : i32 to index
    %c0_7 = arith.constant 0 : index
    %12 = memref.load %arg1[%11, %c0_7] : memref<6x2xi32, #tpu.memory_space<smem>>
    %13 = vector.broadcast %12 : i32 to vector<2x64xi32>
    %14 = arith.select %10, %13, %8 : vector<2x64xi1>, vector<2x64xi32>
    %c1_i32 = arith.constant 1 : i32
    %15 = vector.broadcast %c1_i32 : i32 to vector<2x64xi32>
    %16 = arith.cmpi eq, %6, %15 : vector<2x64xi32>
    %17 = arith.index_cast %arg0 : i32 to index
    %c1 = arith.constant 1 : index
    %18 = memref.load %arg1[%17, %c1] : memref<6x2xi32, #tpu.memory_space<smem>>
    %19 = vector.broadcast %18 : i32 to vector<2x64xi32>
    %20 = arith.select %16, %19, %14 : vector<2x64xi1>, vector<2x64xi32>
    %21 = arith.cmpi eq, %7, %20 : vector<2x64xi32>
    %22 = arith.extui %21 : vector<2x64xi1> to vector<2x64xi32>
    %23 = arith.sitofp %22 : vector<2x64xi32> to vector<2x64xf32>
    %c0_8 = arith.constant 0 : index
    %c0_9 = arith.constant 0 : index
    %24 = vector.load %arg4[%c0_8, %c0_9] : memref<456x128xf32, #tpu.memory_space<vmem>>, vector<64x128xf32>
    %cst = arith.constant dense<0.000000e+00> : vector<2x128xf32>
    %25 = tpu.matmul %23, %24, %cst {dimension_numbers = #tpu.dot_dimension_numbers<[1], [0], [0], [1], [0, 0, 1, 1], [], []>} : vector<2x64xf32>, vector<64x128xf32>, vector<2x128xf32> -> vector<2x128xf32>
    %26 = vector.extract_strided_slice %25 {offsets = [0, 0], sizes = [2, 16], strides = [1, 1]} : vector<2x128xf32> to vector<2x16xf32>
    %27 = vector.shape_cast %4 : vector<2x32xf32> to vector<2x1x32xf32>
    %28 = vector.shape_cast %27 : vector<2x1x32xf32> to vector<2x1x32xf32>
    %29 = vector.broadcast %28 : vector<2x1x32xf32> to vector<2x8x32xf32>
    %30 = vector.shape_cast %29 : vector<2x8x32xf32> to vector<16x32xf32>
    %31 = tpu.concatenate %5, %30 in 1 : vector<16x64xf32>, vector<16x32xf32> -> vector<16x96xf32>
    %c64 = arith.constant 64 : index
    %c0_10 = arith.constant 0 : index
    %32 = vector.load %arg4[%c64, %c0_10] : memref<456x128xf32, #tpu.memory_space<vmem>>, vector<96x128xf32>
    %c448 = arith.constant 448 : index
    %c0_11 = arith.constant 0 : index
    %33 = vector.load %arg4[%c448, %c0_11] : memref<456x128xf32, #tpu.memory_space<vmem>>, vector<1x128xf32>
    %c449 = arith.constant 449 : index
    %c0_12 = arith.constant 0 : index
    %34 = vector.load %arg4[%c449, %c0_12] : memref<456x128xf32, #tpu.memory_space<vmem>>, vector<1x128xf32>
    %cst_13 = arith.constant dense<0.000000e+00> : vector<16x128xf32>
    %35 = tpu.matmul %31, %32, %cst_13 {dimension_numbers = #tpu.dot_dimension_numbers<[1], [0], [0], [1], [0, 0, 1, 1], [], []>} : vector<16x96xf32>, vector<96x128xf32>, vector<16x128xf32> -> vector<16x128xf32>
    %36 = vector.broadcast %33 : vector<1x128xf32> to vector<16x128xf32>
    %37 = arith.addf %35, %36 : vector<16x128xf32>
    %38 = math.tanh %37 : vector<16x128xf32>
    %39 = vector.broadcast %34 : vector<1x128xf32> to vector<16x128xf32>
    %40 = arith.mulf %38, %39 : vector<16x128xf32>
    %cst_14 = arith.constant dense<0.000000e+00> : vector<16xf32>
    %41 = vector.multi_reduction <add>, %40, %cst_14 [1] : vector<16x128xf32> to vector<16xf32>
    %42 = vector.shape_cast %41 : vector<16xf32> to vector<16x1xf32>
    %43 = vector.shape_cast %42 : vector<16x1xf32> to vector<2x8x1xf32>
    %cst_15 = arith.constant dense<0xFF800000> : vector<2x1xf32>
    %44 = vector.multi_reduction <maximumf>, %43, %cst_15 [1] : vector<2x8x1xf32> to vector<2x1xf32>
    %45 = vector.shape_cast %44 : vector<2x1xf32> to vector<2x1x1xf32>
    %46 = vector.broadcast %45 : vector<2x1x1xf32> to vector<2x8x1xf32>
    %47 = arith.subf %43, %46 : vector<2x8x1xf32>
    %48 = math.exp %47 : vector<2x8x1xf32>
    %cst_16 = arith.constant dense<0.000000e+00> : vector<2x1xf32>
    %49 = vector.multi_reduction <add>, %48, %cst_16 [1] : vector<2x8x1xf32> to vector<2x1xf32>
    %50 = vector.shape_cast %49 : vector<2x1xf32> to vector<2x1x1xf32>
    %51 = vector.shape_cast %5 : vector<16x64xf32> to vector<2x8x64xf32>
    %52 = vector.broadcast %48 : vector<2x8x1xf32> to vector<2x8x64xf32>
    %53 = arith.mulf %52, %51 : vector<2x8x64xf32>
    %cst_17 = arith.constant dense<0.000000e+00> : vector<2x64xf32>
    %54 = vector.multi_reduction <add>, %53, %cst_17 [1] : vector<2x8x64xf32> to vector<2x64xf32>
    %55 = vector.shape_cast %50 : vector<2x1x1xf32> to vector<2x1xf32>
    %56 = tpu.reciprocal %55 : vector<2x1xf32> -> vector<2x1xf32>
    %57 = vector.broadcast %56 : vector<2x1xf32> to vector<2x64xf32>
    %58 = arith.mulf %54, %57 : vector<2x64xf32>
    %59 = tpu.concatenate %26, %58 in 1 : vector<2x16xf32>, vector<2x64xf32> -> vector<2x80xf32>
    %c160 = arith.constant 160 : index
    %c0_18 = arith.constant 0 : index
    %60 = vector.load %arg4[%c160, %c0_18] : memref<456x128xf32, #tpu.memory_space<vmem>>, vector<112x128xf32>
    %c450 = arith.constant 450 : index
    %c0_19 = arith.constant 0 : index
    %61 = vector.load %arg4[%c450, %c0_19] : memref<456x128xf32, #tpu.memory_space<vmem>>, vector<1x128xf32>
    %62 = tpu.concatenate %59, %3 in 1 : vector<2x80xf32>, vector<2x32xf32> -> vector<2x112xf32>
    %cst_20 = arith.constant dense<0.000000e+00> : vector<2x128xf32>
    %63 = tpu.matmul %62, %60, %cst_20 {dimension_numbers = #tpu.dot_dimension_numbers<[1], [0], [0], [1], [0, 0, 1, 1], [], []>} : vector<2x112xf32>, vector<112x128xf32>, vector<2x128xf32> -> vector<2x128xf32>
    %64 = vector.broadcast %61 : vector<1x128xf32> to vector<2x128xf32>
    %65 = arith.addf %63, %64 : vector<2x128xf32>
    %66 = vector.extract_strided_slice %65 {offsets = [0, 0], sizes = [2, 32], strides = [1, 1]} : vector<2x128xf32> to vector<2x32xf32>
    %67 = arith.negf %66 : vector<2x32xf32>
    %68 = math.exp %67 : vector<2x32xf32>
    %cst_21 = arith.constant 1.000000e+00 : f32
    %69 = vector.broadcast %cst_21 : f32 to vector<2x32xf32>
    %70 = arith.addf %69, %68 : vector<2x32xf32>
    %71 = arith.divf %69, %70 : vector<2x32xf32>
    %72 = vector.extract_strided_slice %65 {offsets = [0, 32], sizes = [2, 32], strides = [1, 1]} : vector<2x128xf32> to vector<2x32xf32>
    %73 = arith.negf %72 : vector<2x32xf32>
    %74 = math.exp %73 : vector<2x32xf32>
    %cst_22 = arith.constant 1.000000e+00 : f32
    %75 = vector.broadcast %cst_22 : f32 to vector<2x32xf32>
    %76 = arith.addf %75, %74 : vector<2x32xf32>
    %77 = arith.divf %75, %76 : vector<2x32xf32>
    %78 = vector.extract_strided_slice %65 {offsets = [0, 64], sizes = [2, 32], strides = [1, 1]} : vector<2x128xf32> to vector<2x32xf32>
    %79 = vector.extract_strided_slice %65 {offsets = [0, 96], sizes = [2, 32], strides = [1, 1]} : vector<2x128xf32> to vector<2x32xf32>
    %80 = arith.mulf %71, %79 : vector<2x32xf32>
    %81 = arith.addf %78, %80 : vector<2x32xf32>
    %82 = math.tanh %81 : vector<2x32xf32>
    %cst_23 = arith.constant 1.000000e+00 : f32
    %83 = vector.broadcast %cst_23 : f32 to vector<2x32xf32>
    %84 = arith.subf %83, %77 : vector<2x32xf32>
    %85 = arith.mulf %84, %82 : vector<2x32xf32>
    %86 = arith.mulf %77, %3 : vector<2x32xf32>
    %87 = arith.addf %85, %86 : vector<2x32xf32>
    %c272 = arith.constant 272 : index
    %c0_24 = arith.constant 0 : index
    %88 = vector.load %arg4[%c272, %c0_24] : memref<456x128xf32, #tpu.memory_space<vmem>>, vector<64x128xf32>
    %c451 = arith.constant 451 : index
    %c0_25 = arith.constant 0 : index
    %89 = vector.load %arg4[%c451, %c0_25] : memref<456x128xf32, #tpu.memory_space<vmem>>, vector<1x128xf32>
    %90 = tpu.concatenate %87, %4 in 1 : vector<2x32xf32>, vector<2x32xf32> -> vector<2x64xf32>
    %cst_26 = arith.constant dense<0.000000e+00> : vector<2x128xf32>
    %91 = tpu.matmul %90, %88, %cst_26 {dimension_numbers = #tpu.dot_dimension_numbers<[1], [0], [0], [1], [0, 0, 1, 1], [], []>} : vector<2x64xf32>, vector<64x128xf32>, vector<2x128xf32> -> vector<2x128xf32>
    %92 = vector.broadcast %89 : vector<1x128xf32> to vector<2x128xf32>
    %93 = arith.addf %91, %92 : vector<2x128xf32>
    %94 = vector.extract_strided_slice %93 {offsets = [0, 0], sizes = [2, 32], strides = [1, 1]} : vector<2x128xf32> to vector<2x32xf32>
    %95 = arith.negf %94 : vector<2x32xf32>
    %96 = math.exp %95 : vector<2x32xf32>
    %cst_27 = arith.constant 1.000000e+00 : f32
    %97 = vector.broadcast %cst_27 : f32 to vector<2x32xf32>
    %98 = arith.addf %97, %96 : vector<2x32xf32>
    %99 = arith.divf %97, %98 : vector<2x32xf32>
    %100 = vector.extract_strided_slice %93 {offsets = [0, 32], sizes = [2, 32], strides = [1, 1]} : vector<2x128xf32> to vector<2x32xf32>
    %101 = arith.negf %100 : vector<2x32xf32>
    %102 = math.exp %101 : vector<2x32xf32>
    %cst_28 = arith.constant 1.000000e+00 : f32
    %103 = vector.broadcast %cst_28 : f32 to vector<2x32xf32>
    %104 = arith.addf %103, %102 : vector<2x32xf32>
    %105 = arith.divf %103, %104 : vector<2x32xf32>
    %106 = vector.extract_strided_slice %93 {offsets = [0, 64], sizes = [2, 32], strides = [1, 1]} : vector<2x128xf32> to vector<2x32xf32>
    %107 = vector.extract_strided_slice %93 {offsets = [0, 96], sizes = [2, 32], strides = [1, 1]} : vector<2x128xf32> to vector<2x32xf32>
    %108 = arith.mulf %99, %107 : vector<2x32xf32>
    %109 = arith.addf %106, %108 : vector<2x32xf32>
    %110 = math.tanh %109 : vector<2x32xf32>
    %cst_29 = arith.constant 1.000000e+00 : f32
    %111 = vector.broadcast %cst_29 : f32 to vector<2x32xf32>
    %112 = arith.subf %111, %105 : vector<2x32xf32>
    %113 = arith.mulf %112, %110 : vector<2x32xf32>
    %114 = arith.mulf %105, %4 : vector<2x32xf32>
    %115 = arith.addf %113, %114 : vector<2x32xf32>
    %c336 = arith.constant 336 : index
    %c0_30 = arith.constant 0 : index
    %116 = vector.load %arg4[%c336, %c0_30] : memref<456x128xf32, #tpu.memory_space<vmem>>, vector<112x128xf32>
    %c452 = arith.constant 452 : index
    %c0_31 = arith.constant 0 : index
    %117 = vector.load %arg4[%c452, %c0_31] : memref<456x128xf32, #tpu.memory_space<vmem>>, vector<1x128xf32>
    %118 = tpu.concatenate %115, %58, %26 in 1 : vector<2x32xf32>, vector<2x64xf32>, vector<2x16xf32> -> vector<2x112xf32>
    %cst_32 = arith.constant dense<0.000000e+00> : vector<2x128xf32>
    %119 = tpu.matmul %118, %116, %cst_32 {dimension_numbers = #tpu.dot_dimension_numbers<[1], [0], [0], [1], [0, 0, 1, 1], [], []>} : vector<2x112xf32>, vector<112x128xf32>, vector<2x128xf32> -> vector<2x128xf32>
    %120 = vector.broadcast %117 : vector<1x128xf32> to vector<2x128xf32>
    %121 = arith.addf %119, %120 : vector<2x128xf32>
    %122 = tpu.concatenate %87, %115 in 0 : vector<2x32xf32>, vector<2x32xf32> -> vector<4x32xf32>
    %c0_33 = arith.constant 0 : index
    %c0_34 = arith.constant 0 : index
    %123 = vector.load %arg6[%c0_33, %c0_34] : memref<4x32xf32, #tpu.memory_space<vmem>>, vector<4x32xf32>
    tpu.vector_store %arg6[%c0_33, %c0_34], %122 {strides = array<i32>} : memref<4x32xf32, #tpu.memory_space<vmem>>, vector<4x32xf32>,
    %cst_35 = arith.constant 0.000000e+00 : f32
    %124 = vector.broadcast %cst_35 : f32 to vector<2x96xf32>
    %125 = tpu.concatenate %87, %124 in 1 : vector<2x32xf32>, vector<2x96xf32> -> vector<2x128xf32>
    %126 = tpu.concatenate %115, %124 in 1 : vector<2x32xf32>, vector<2x96xf32> -> vector<2x128xf32>
    %cst_36 = arith.constant 0.000000e+00 : f32
    %127 = vector.broadcast %cst_36 : f32 to vector<2x128xf32>
    %128 = tpu.concatenate %121, %125, %126, %127 in 0 : vector<2x128xf32>, vector<2x128xf32>, vector<2x128xf32>, vector<2x128xf32> -> vector<8x128xf32>
    %c0_37 = arith.constant 0 : index
    %c0_38 = arith.constant 0 : index
    %c0_39 = arith.constant 0 : index
    %129 = vector.load %arg5[%c0_37, %c0_38, %c0_39] : memref<1x8x128xf32, #tpu.memory_space<vmem>>, vector<1x8x128xf32>
    %130 = vector.shape_cast %129 : vector<1x8x128xf32> to vector<8x128xf32>
    %131 = vector.shape_cast %128 : vector<8x128xf32> to vector<1x8x128xf32>
    tpu.vector_store %arg5[%c0_37, %c0_38, %c0_39], %131 {strides = array<i32>} : memref<1x8x128xf32, #tpu.memory_space<vmem>>, vector<1x8x128xf32>,
    return
  }
  func.func @transform_0(%arg0: i32, %arg1: memref<6x2xi32, #tpu.memory_space<smem>>) -> (i32, i32) {
    %c0_i32 = arith.constant 0 : i32
    %c0_i32_0 = arith.constant 0 : i32
    %c0_i32_1 = arith.constant 0 : i32
    return %c0_i32, %c0_i32_0 : i32, i32
  }
  func.func @transform_1(%arg0: i32, %arg1: memref<6x2xi32, #tpu.memory_space<smem>>) -> (i32, i32) {
    %c0_i32 = arith.constant 0 : i32
    %c0_i32_0 = arith.constant 0 : i32
    %c0_i32_1 = arith.constant 0 : i32
    return %c0_i32, %c0_i32_0 : i32, i32
  }
  func.func @transform_2(%arg0: i32, %arg1: memref<6x2xi32, #tpu.memory_space<smem>>) -> (i32, i32) {
    %c0_i32 = arith.constant 0 : i32
    %c0_i32_0 = arith.constant 0 : i32
    %c0_i32_1 = arith.constant 0 : i32
    return %c0_i32, %c0_i32_0 : i32, i32
  }
  func.func @transform_3(%arg0: i32, %arg1: memref<6x2xi32, #tpu.memory_space<smem>>) -> (i32, i32, i32) {
    %c0_i32 = arith.constant 0 : i32
    %c0_i32_0 = arith.constant 0 : i32
    %c0_i32_1 = arith.constant 0 : i32
    return %arg0, %c0_i32, %c0_i32_0 : i32, i32, i32
  }
}

</mosaic_0001>

<llo_original>
// kernel: _decode_impl.1
$region0: #{_decode_impl.1}
  #allocation0 [shape = 'u32[]', space=smem, size = 0x4, offset = 0x4, fixed_abs, tag = 'smem constant byte address 0x4 - core index']
  #allocation1 [shape = 'u32[144,128]{1,0:T(1,128)}', space=vmem, size = 0x12000, scoped, tag = 'internal scratch']
  #allocation2 [shape = 'f32[4,32]{1,0:T(4,128)}', space=vmem, size = 0x800, scoped, tag = 'scratch operand']
  #allocation3 [shape = 's32[1]{0}', space=sflag, size = 0x4, scoped, tag = 'scoped memory for _decode_impl.1']
  #allocation4 [shape = 'u8[4096]{0}', space=smem, size = 0x1000, scoped, tag = 'prefetched SMEM operand 0']
  %s0 = inlined_call_operand.vmem [shape: s32[6,2], index: 0, kind: input, shape index: {}]
  %s1 = inlined_call_operand.hbm [shape: f32[4,32], index: 1, kind: input, shape index: {}]
  %s2 = inlined_call_operand.vmem [shape: f32[16,64], index: 2, kind: input, shape index: {}]
  %s3 = inlined_call_operand.hbm [shape: f32[456,128], index: 3, kind: input, shape index: {}]
  %s4 = inlined_call_operand.vmem [shape: f32[6,8,128], index: 4, kind: output, shape index: {}]
  %s5 = sld [smem:[#allocation0]]
  $region57: #{_decode_impl.1} parent=0
    _
  %s7 = ssub.s32 1, %s5
  %s8 = scalar_select 0, %s7, %s5
  %s9 = sshll.u32 %s0, 4
  %s10 = int_to_ptr.vmem [resolvable:$true] %s9
  %12 = dma.vmem_to_smem %s10, 128, [#allocation4], [#allocation3]
  %13 = dma.done [#allocation3], 128
  %14 = sfence
  $region1: #{_decode_impl.1} parent=0
    #allocation5 [shape = 'u8[2048]{0}', space=vmem, size = 0x800, scoped, tag = 'input window, operand 1, single buffered']
    #allocation6 [shape = 's32[2]{0}', space=sflag, size = 0x8, scoped, tag = 'scoped memory for _decode_impl.1']
    #allocation7 [shape = 'u8[233472]{0}', space=vmem, size = 0x39000, scoped, tag = 'input window, operand 3, single buffered']
    #allocation8 [shape = 's32[1]{0}', space=sflag, size = 0x4, scoped, tag = 'scoped memory for _decode_impl.1']
    %15 = vsyncpa [#allocation6], 0
    %16 = vsyncpa [#allocation8], 0
    loop: start=0, step=1, limit=8
    $region2: #{_decode_impl.1} parent=1 // loop_pre_header
      _
    $region3: #{_decode_impl.1} parent=1 // loop_header
      %s18 = sphi 0, %s22
      %p19 = scmp.ge.s32.totalorder %s18, 8
      %s26 = sphi 0, %s26
      %s28 = sphi 0, %s26
      %s29 = sphi 0, %s28
      %s43 = sphi 0, %s29
      %s47 = sphi 0, %s47
      %s49 = sphi 0, %s47
      %s50 = sphi 0, %s49
      %s64 = sphi 0, %s50
      %s68 = sphi 0, %s68
      %s70 = sphi 0, %s68
      %s71 = sphi 0, %s70
      %s85 = sphi 0, %s71
      %s91 = sphi 0, %s93
      %s94 = sphi 0, %s91
      %s95 = sphi 0, %s94
      %s111 = sphi 0, %s95
    $region4: #{_decode_impl.1} parent=1 // loop_header_branch
      %21 = sbr.rel (%p19) target = $region8
    $region5: #{_decode_impl.1} parent=1 // loop_body
      %s23 = ssub.s32 %s18, 1
      %s24 = ssub.s32 %s18, 2
      %s25 = sadd.s32 %s18, 1
      %s27 = sadd.s32 %s26, 1
      %p30 = scmp.eq.s32.totalorder %s18, 5
      %p31 = scmp.ne.s32.totalorder %s26, %s28
      %p32 = scmp.eq.s32.totalorder %s18, 0
      %p33 = por %p31, %p32
      %p34 = scmp.ne.s32.totalorder %s26, %s28
      %p35 = scmp.eq.s32.totalorder %s23, 5
      %p36 = por %p34, %p35
      %p37 = scmp.ne.s32.totalorder %s28, %s29
      %p38 = scmp.eq.s32.totalorder %s23, 0
      %p39 = por %p37, %p38
      %p40 = scmp.ne.s32.totalorder %s28, %s29
      %p41 = scmp.eq.s32.totalorder %s24, 5
      %p42 = por %p40, %p41
      %p44 = scmp.ne.s32.totalorder %s29, %s43
      %p45 = scmp.eq.s32.totalorder %s24, 0
      %p46 = por %p44, %p45
      %s48 = sadd.s32 %s47, 1
      %p51 = scmp.eq.s32.totalorder %s18, 5
      %p52 = scmp.ne.s32.totalorder %s47, %s49
      %p53 = scmp.eq.s32.totalorder %s18, 0
      %p54 = por %p52, %p53
      %p55 = scmp.ne.s32.totalorder %s47, %s49
      %p56 = scmp.eq.s32.totalorder %s23, 5
      %p57 = por %p55, %p56
      %p58 = scmp.ne.s32.totalorder %s49, %s50
      %p59 = scmp.eq.s32.totalorder %s23, 0
      %p60 = por %p58, %p59
      %p61 = scmp.ne.s32.totalorder %s49, %s50
      %p62 = scmp.eq.s32.totalorder %s24, 5
      %p63 = por %p61, %p62
      %p65 = scmp.ne.s32.totalorder %s50, %s64
      %p66 = scmp.eq.s32.totalorder %s24, 0
      %p67 = por %p65, %p66
      %s69 = sadd.s32 %s68, 1
      %p72 = scmp.eq.s32.totalorder %s18, 5
      %p73 = scmp.ne.s32.totalorder %s68, %s70
      %p74 = scmp.eq.s32.totalorder %s18, 0
      %p75 = por %p73, %p74
      %p76 = scmp.ne.s32.totalorder %s68, %s70
      %p77 = scmp.eq.s32.totalorder %s23, 5
      %p78 = por %p76, %p77
      %p79 = scmp.ne.s32.totalorder %s70, %s71
      %p80 = scmp.eq.s32.totalorder %s23, 0
      %p81 = por %p79, %p80
      %p82 = scmp.ne.s32.totalorder %s70, %s71
      %p83 = scmp.eq.s32.totalorder %s24, 5
      %p84 = por %p82, %p83
      %p86 = scmp.ne.s32.totalorder %s71, %s85
      %p87 = scmp.eq.s32.totalorder %s24, 0
      %p88 = por %p86, %p87
      %s89 = ssub.s32 %s18, %s25
      %p90 = scmp.eq.s32.totalorder %s89, 0
      %s92 = sadd.s32 %s91, 1
      %s93 = scalar_select %p90, %s91, %s92
      %p96 = pneg %p90
      %p97 = scmp.eq.s32.totalorder %s18, 5
      %p98 = por %p96, %p97
      %p99 = scmp.ne.s32.totalorder %s91, %s94
      %p100 = scmp.eq.s32.totalorder %s18, 0
      %p101 = por %p99, %p100
      %p102 = scmp.ne.s32.totalorder %s91, %s94
      %p103 = scmp.eq.s32.totalorder %s23, 5
      %p104 = por %p102, %p103
      %p105 = scmp.ne.s32.totalorder %s94, %s95
      %p106 = scmp.eq.s32.totalorder %s23, 0
      %p107 = por %p105, %p106
      %p108 = scmp.ne.s32.totalorder %s94, %s95
      %p109 = scmp.eq.s32.totalorder %s24, 5
      %p110 = por %p108, %p109
      %p112 = scmp.ne.s32.totalorder %s95, %s111
      %p113 = scmp.eq.s32.totalorder %s24, 0
      %p114 = por %p112, %p113
      %p115 = scmp.le.s32.totalorder 1, %s18
      %p116 = scmp.lt.s32.totalorder %s18, 7
      %p117 = pnand %p115, %p116
      %p118 = pneg %p117
      // Predicated region
      $region9: #{_decode_impl.1} parent=5 // pred_check
        _
      $region10: #{_decode_impl.1} parent=5 // pred_check_branch
        %120 = sbr.rel (%p117) target = $region12
      $region11: #{_decode_impl.1} parent=5 // pred_region
        %s121 = ssub.s32 %s18, 1
        // Predicated region
        $region13: #{_decode_impl.1} parent=11 // pred_check
          %p122 = pneg %p39
        $region14: #{_decode_impl.1} parent=11 // pred_check_branch
          %124 = sbr.rel (%p122) target = $region16
        $region15: #{_decode_impl.1} parent=11 // pred_region
          %s126 = ssub.s32 64, 64
          %127 = vsyncadd [#allocation6], %s126
          %s129 = sshll.u32 [#allocation5], 4
          %s130 = int_to_ptr.vmem [resolvable:$true] %s129
          %132 = dma.hbm_to_vmem [thread:$0]  %s1, 64, %s130, [#allocation6]
        $region16: #{_decode_impl.1} parent=11 // pred_fallthru
          _
        // Predicated region
        $region17: #{_decode_impl.1} parent=11 // pred_check
          %p133 = pneg %p60
        $region18: #{_decode_impl.1} parent=11 // pred_check_branch
          %135 = sbr.rel (%p133) target = $region20
        $region19: #{_decode_impl.1} parent=11 // pred_region
          _
        $region20: #{_decode_impl.1} parent=11 // pred_fallthru
          _
        // Predicated region
        $region21: #{_decode_impl.1} parent=11 // pred_check
          %p136 = pneg %p81
        $region22: #{_decode_impl.1} parent=11 // pred_check_branch
          %138 = sbr.rel (%p136) target = $region24
        $region23: #{_decode_impl.1} parent=11 // pred_region
          %s140 = ssub.s32 7296, 7296
          %141 = vsyncadd [#allocation8], %s140
          %s142 = sshll.u32 [#allocation7], 4
          %s143 = int_to_ptr.vmem [resolvable:$true] %s142
          %148 = dma.hbm_to_vmem [thread:$0]  %s3, 7296, %s143, [#allocation8], 128, 128, 8
        $region24: #{_decode_impl.1} parent=11 // pred_fallthru
          _
      $region12: #{_decode_impl.1} parent=5 // pred_fallthru
        _
      %p149 = scmp.lt.s32.totalorder %s18, 6
      // Predicated region
      $region25: #{_decode_impl.1} parent=5 // pred_check
        %p150 = pneg %p149
      $region26: #{_decode_impl.1} parent=5 // pred_check_branch
        %152 = sbr.rel (%p150) target = $region28
      $region27: #{_decode_impl.1} parent=5 // pred_region
        _
      $region28: #{_decode_impl.1} parent=5 // pred_fallthru
        _
      %p153 = scmp.le.s32.totalorder 1, %s18
      %p154 = scmp.lt.s32.totalorder %s18, 7
      %p155 = pnand %p153, %p154
      %p156 = pneg %p155
      // Predicated region
      $region29: #{_decode_impl.1} parent=5 // pred_check
        _
      $region30: #{_decode_impl.1} parent=5 // pred_check_branch
        %158 = sbr.rel (%p155) target = $region32
      $region31: #{_decode_impl.1} parent=5 // pred_region
        %s159 = ssub.s32 %s18, 1
        // Predicated region
        $region33: #{_decode_impl.1} parent=31 // pred_check
          %p160 = pneg %p39
        $region34: #{_decode_impl.1} parent=31 // pred_check_branch
          %162 = sbr.rel (%p160) target = $region36
        $region35: #{_decode_impl.1} parent=31 // pred_region
          %163 = dma.done [#allocation6], 64
        $region36: #{_decode_impl.1} parent=31 // pred_fallthru
          _
        // Predicated region
        $region37: #{_decode_impl.1} parent=31 // pred_check
          %p164 = pneg %p81
        $region38: #{_decode_impl.1} parent=31 // pred_check_branch
          %166 = sbr.rel (%p164) target = $region40
        $region39: #{_decode_impl.1} parent=31 // pred_region
          %167 = dma.done [#allocation8], 7296
        $region40: #{_decode_impl.1} parent=31 // pred_fallthru
          _
        %p168 = pneg %p39
        %p169 = pneg %p36
        %p170 = pneg %p60
        %p171 = pneg %p57
        %p172 = pneg %p81
        %p173 = pneg %p78
        %p174 = pneg %p107
        %p175 = pneg %p104
        %p176 = scmp.lt.s32.totalorder %s23, 5
        %s177 = scalar_select %p176, %s23, 5
        %s178 = smul.addr %s177, 8
        %s179 = scalar_lea.vmem %s4, %s178
        %p180 = scmp.lt.s32.totalorder %s23, 5
        %s181 = scalar_select %p180, %s23, 5
        %s182 = smul.addr %s181, 8
        %s183 = scalar_lea.vmem %s4, %s182
        %p184 = scmp.eq.s32.totalorder %s23, 0
        // Predicated region
        $region41: #{_decode_impl.1} parent=31 // pred_check
          %p185 = pneg %p184
        $region42: #{_decode_impl.1} parent=31 // pred_check_branch
          %187 = sbr.rel (%p185) target = $region44
        $region43: #{_decode_impl.1} parent=31 // pred_region
          %v188 = vld [vmem:[#allocation5] sm:$0xf]
          %vm189 = vcmask 257024
          %190 = vst.msk [vmem:[#allocation2] sm:$0xf] %vm189, %v188
        $region44: #{_decode_impl.1} parent=31 // pred_fallthru
          _
        %v191 = vld [vmem:[#allocation2] sm:$0x3]
        %v192 = vld [vmem:[#allocation2 + $0x2] sm:$0x3]
        %v193 = vld [vmem:[%s2] sm:$0xff]
        %v194 = vld [vmem:[%s2 + $0x8] sm:$0xff]
        %v195 = vlaneseq
        %v196 = vshrl.u32 %v195, 7
        %v197 = vlaneseq
        %v198 = vand.u32 %v197, 127
        %vm199 = vcmp.eq.s32.totalorder %v196, 0
        %s200 = smul.u32 %s23, 128
        %s201 = sld [smem:[#allocation4 + %s200]]
        %v202 = vstv %s201
        %v203 = vsel %vm199, %v202, 0
        %vm204 = vcmp.eq.s32.totalorder %v196, 1
        %s205 = sadd.s32 %s200, 1
        %s206 = sld [smem:[#allocation4 + %s205]]
        %v207 = vstv %s206
        %v208 = vsel %vm204, %v207, %v203
        %vm209 = vcmp.eq.s32.totalorder %v198, %v208
        %v210 = vsel %vm209, 1, 0
        %v211 = vcvt.s32.f32 %v210
        %v212 = vld [vmem:[#allocation7] sm:$0xff]
        %v213 = vld [vmem:[#allocation7 + $0x8] sm:$0xff]
        %v214 = vld [vmem:[#allocation7 + $0x10] sm:$0xff]
        %v215 = vld [vmem:[#allocation7 + $0x18] sm:$0xff]
        %v216 = vld [vmem:[#allocation7 + $0x20] sm:$0xff]
        %v217 = vld [vmem:[#allocation7 + $0x28] sm:$0xff]
        %v218 = vld [vmem:[#allocation7 + $0x30] sm:$0xff]
        %v219 = vld [vmem:[#allocation7 + $0x38] sm:$0xff]
        %vm220 = vcmask 523264
        %v222 = vsel %vm220, %v211, 0
        %224 = vmatprep.subr.mxu0 0.0
        %225 = vmatpush1.msra.mxu0 0.0
        %226 = vmatprep.subr.mxu0 0.0
        %227 = vmatpush1.msra.mxu0 0.0
        %228 = vmatprep.subr.mxu0 0.0
        %229 = vmatpush1.msra.mxu0 0.0
        %230 = vmatprep.subr.mxu0 0.0
        %231 = vmatpush1.msra.mxu0 0.0
        %232 = vmatprep.subr.mxu0 0.0
        %233 = vmatpush1.msra.mxu0 0.0
        %234 = vmatprep.subr.mxu0 0.0
        %235 = vmatpush1.msra.mxu0 0.0
        %236 = vmatprep.subr.mxu0 0.0
        %237 = vmatpush1.msra.mxu0 0.0
        %238 = vmatprep.subr.mxu0 0.0
        %239 = vmatpush1.msra.mxu0 0.0
        %240 = vmatprep.subr.mxu0 0.0
        %241 = vmatpush1.msra.mxu0 %v219
        %242 = vmatprep.subr.mxu0 0.0
        %243 = vmatpush1.msra.mxu0 %v218
        %244 = vmatprep.subr.mxu0 0.0
        %245 = vmatpush1.msra.mxu0 %v217
        %246 = vmatprep.subr.mxu0 0.0
        %247 = vmatpush1.msra.mxu0 %v216
        %248 = vmatprep.subr.mxu0 0.0
        %249 = vmatpush1.msra.mxu0 %v215
        %250 = vmatprep.subr.mxu0 0.0
        %251 = vmatpush1.msra.mxu0 %v214
        %252 = vmatprep.subr.mxu0 0.0
        %253 = vmatpush1.msra.mxu0 %v213
        %254 = vmatprep.subr.mxu0 0.0
        %255 = vmatpush1.msra.mxu0 %v212
        %256 = vmatprep.subr.mxu0 0.0
        %257 = vmatpush2.msra.mxu0 0.0
        %258 = vmatprep.subr.mxu0 0.0
        %259 = vmatpush2.msra.mxu0 0.0
        %260 = vmatprep.subr.mxu0 0.0
        %261 = vmatpush2.msra.mxu0 0.0
        %262 = vmatprep.subr.mxu0 0.0
        %263 = vmatpush2.msra.mxu0 0.0
        %264 = vmatprep.subr.mxu0 0.0
        %265 = vmatpush2.msra.mxu0 0.0
        %266 = vmatprep.subr.mxu0 0.0
        %267 = vmatpush2.msra.mxu0 0.0
        %268 = vmatprep.subr.mxu0 0.0
        %269 = vmatpush2.msra.mxu0 0.0
        %270 = vmatprep.subr.mxu0 0.0
        %271 = vmatpush2.msra.mxu0 0.0
        %272 = vmatprep.subr.mxu0 0.0
        %273 = vmatpush2.msra.mxu0 0.0
        %274 = vmatprep.subr.mxu0 0.0
        %275 = vmatpush2.msra.mxu0 0.0
        %276 = vmatprep.subr.mxu0 0.0
        %277 = vmatpush2.msra.mxu0 0.0
        %278 = vmatprep.subr.mxu0 0.0
        %279 = vmatpush2.msra.mxu0 0.0
        %280 = vmatprep.subr.mxu0 0.0
        %281 = vmatpush2.msra.mxu0 0.0
        %282 = vmatprep.subr.mxu0 0.0
        %283 = vmatpush2.msra.mxu0 0.0
        %284 = vmatprep.subr.mxu0 0.0
        %285 = vmatpush2.msra.mxu0 0.0
        %286 = vmatprep.subr.mxu0 0.0
        %287 = vmatpush2.msra.mxu0 0.0
        %288 = vmatprep.mubr.f32.mxu0 0.0
        %289 = vmatmul.mubr.f32.gmra.mxu0 %v222
        %v290 = vpop.f32.mrf.mxu0
        %v291 = vadd.f32 0.0, %v290
        %v292 = vpop.f32.mrf.mxu0
        %293 = vdwg.mxu0
        %v296 = vunpack.c.l.s4 1966171168
        %v297 = vunpack.c.0.s8 %v296
        %v298 = vlaneseq
        %v299 = vshrl.u32 %v298, 7
        %v300 = vsub.s32 %v297, %v299
        %v301 = vrot.slane %v192, %v300
        %v302 = vcombine.high %v301, %v301
        %v304 = vunpack.c.l.s4 1966171168
        %v305 = vunpack.c.0.s8 %v304
        %v306 = vlaneseq
        %v307 = vshrl.u32 %v306, 7
        %v308 = vsub.s32 %v305, %v307
        %v309 = vrot.slane %v301, %v308
        %v311 = vunpack.c.l.s4 1966171168
        %v312 = vunpack.c.0.s8 %v311
        %v313 = vlaneseq
        %v314 = vshrl.u32 %v313, 7
        %v315 = vsub.s32 %v312, %v314
        %v316 = vrot.slane %v302, %v315
        %v317 = vlaneseq
        %v318 = vshrl.u32 %v317, 7
        %v319 = vsub.s32 0, %v318
        %v320 = vrot.slane %v309, %v319
        %v321 = vlaneseq
        %v322 = vshrl.u32 %v321, 7
        %v323 = vsub.s32 0, %v322
        %v324 = vrot.slane %v316, %v323
        %325 = vrot.lane.b32.xlu0 %v320, 64
        %v326 = vpop.permute.xlu0 %325
        %327 = vrot.lane.b32.xlu0 %v324, 64
        %v328 = vpop.permute.xlu0 %327
        %v331 = vsel %vm220, %v193, %v326
        %v332 = vsel %vm220, %v194, %v328
        %v333 = vld [vmem:[#allocation7 + $0x40] sm:$0xff]
        %v334 = vld [vmem:[#allocation7 + $0x48] sm:$0xff]
        %v335 = vld [vmem:[#allocation7 + $0x50] sm:$0xff]
        %v336 = vld [vmem:[#allocation7 + $0x58] sm:$0xff]
        %v337 = vld [vmem:[#allocation7 + $0x60] sm:$0xff]
        %v338 = vld [vmem:[#allocation7 + $0x68] sm:$0xff]
        %v339 = vld [vmem:[#allocation7 + $0x70] sm:$0xff]
        %v340 = vld [vmem:[#allocation7 + $0x78] sm:$0xff]
        %v341 = vld [vmem:[#allocation7 + $0x80] sm:$0xff]
        %v342 = vld [vmem:[#allocation7 + $0x88] sm:$0xff]
        %v343 = vld [vmem:[#allocation7 + $0x90] sm:$0xff]
        %v344 = vld [vmem:[#allocation7 + $0x98] sm:$0xff]
        %v345 = vld [vmem:[#allocation7 + $0x1c0] sm:$0x1]
        %v346 = vld [vmem:[#allocation7 + $0x1c1] sm:$0x1]
        %v347 = vlaneseq
        %v348 = vshrl.u32 %v347, 7
        %v349 = vsub.s32 0, %v348
        %v350 = vrot.slane %v345, %v349
        %vm351 = vcmask 785408
        %v353 = vsel %vm351, %v331, 0
        %v356 = vsel %vm351, %v332, 0
        %358 = vmatprep.subr.mxu0 0.0
        %359 = vmatpush1.msra.mxu0 0.0
        %360 = vmatprep.subr.mxu0 0.0
        %361 = vmatpush1.msra.mxu0 0.0
        %362 = vmatprep.subr.mxu0 0.0
        %363 = vmatpush1.msra.mxu0 0.0
        %364 = vmatprep.subr.mxu0 0.0
        %365 = vmatpush1.msra.mxu0 0.0
        %366 = vmatprep.subr.mxu0 0.0
        %367 = vmatpush1.msra.mxu0 %v344
        %368 = vmatprep.subr.mxu0 0.0
        %369 = vmatpush1.msra.mxu0 %v343
        %370 = vmatprep.subr.mxu0 0.0
        %371 = vmatpush1.msra.mxu0 %v342
        %372 = vmatprep.subr.mxu0 0.0
        %373 = vmatpush1.msra.mxu0 %v341
        %374 = vmatprep.subr.mxu0 0.0
        %375 = vmatpush1.msra.mxu0 %v340
        %376 = vmatprep.subr.mxu0 0.0
        %377 = vmatpush1.msra.mxu0 %v339
        %378 = vmatprep.subr.mxu0 0.0
        %379 = vmatpush1.msra.mxu0 %v338
        %380 = vmatprep.subr.mxu0 0.0
        %381 = vmatpush1.msra.mxu0 %v337
        %382 = vmatprep.subr.mxu0 0.0
        %383 = vmatpush1.msra.mxu0 %v336
        %384 = vmatprep.subr.mxu0 0.0
        %385 = vmatpush1.msra.mxu0 %v335
        %386 = vmatprep.subr.mxu0 0.0
        %387 = vmatpush1.msra.mxu0 %v334
        %388 = vmatprep.subr.mxu0 0.0
        %389 = vmatpush1.msra.mxu0 %v333
        %390 = vmatprep.subr.mxu0 0.0
        %391 = vmatpush2.msra.mxu0 0.0
        %392 = vmatprep.subr.mxu0 0.0
        %393 = vmatpush2.msra.mxu0 0.0
        %394 = vmatprep.subr.mxu0 0.0
        %395 = vmatpush2.msra.mxu0 0.0
        %396 = vmatprep.subr.mxu0 0.0
        %397 = vmatpush2.msra.mxu0 0.0
        %398 = vmatprep.subr.mxu0 0.0
        %399 = vmatpush2.msra.mxu0 0.0
        %400 = vmatprep.subr.mxu0 0.0
        %401 = vmatpush2.msra.mxu0 0.0
        %402 = vmatprep.subr.mxu0 0.0
        %403 = vmatpush2.msra.mxu0 0.0
        %404 = vmatprep.subr.mxu0 0.0
        %405 = vmatpush2.msra.mxu0 0.0
        %406 = vmatprep.subr.mxu0 0.0
        %407 = vmatpush2.msra.mxu0 0.0
        %408 = vmatprep.subr.mxu0 0.0
        %409 = vmatpush2.msra.mxu0 0.0
        %410 = vmatprep.subr.mxu0 0.0
        %411 = vmatpush2.msra.mxu0 0.0
        %412 = vmatprep.subr.mxu0 0.0
        %413 = vmatpush2.msra.mxu0 0.0
        %414 = vmatprep.subr.mxu0 0.0
        %415 = vmatpush2.msra.mxu0 0.0
        %416 = vmatprep.subr.mxu0 0.0
        %417 = vmatpush2.msra.mxu0 0.0
        %418 = vmatprep.subr.mxu0 0.0
        %419 = vmatpush2.msra.mxu0 0.0
        %420 = vmatprep.subr.mxu0 0.0
        %421 = vmatpush2.msra.mxu0 0.0
        %422 = vmatprep.mubr.f32.mxu0 0.0
        %423 = vmatmul.mubr.f32.gmra.mxu0 %v353
        %v424 = vpop.f32.mrf.mxu0
        %v425 = vadd.f32 %v350, %v424
        %v426 = vpop.f32.mrf.mxu0
        %427 = vmatprep.mubr.f32.mxu0 0.0
        %428 = vmatmul.mubr.f32.gmra.mxu0 %v356
        %v429 = vpop.f32.mrf.mxu0
        %v430 = vadd.f32 %v350, %v429
        %v431 = vpop.f32.mrf.mxu0
        %432 = vdwg.mxu0
        %v433 = vtanh.pop %v425
        %v434 = vtanh.pop %v430
        %v435 = vlaneseq
        %v436 = vshrl.u32 %v435, 7
        %v437 = vsub.s32 0, %v436
        %v438 = vrot.slane %v346, %v437
        %v439 = vmul.f32 %v433, %v438
        %v440 = vmul.f32 %v434, %v438
        %441 = vadd.xlane.f32.xlu0 %v439
        %v442 = vpop.xlane.xlu0 %441
        %443 = vadd.xlane.f32.xlu0 %v440
        %v444 = vpop.xlane.xlu0 %443
        %v445 = vrot.slane %v442, 4
        %v446 = vmax.f32 %v442, %v445
        %v447 = vrot.slane %v446, 2
        %v448 = vmax.f32 %v446, %v447
        %v449 = vrot.slane %v448, 1
        %v450 = vmax.f32 %v448, %v449
        %v451 = vrot.slane %v444, 4
        %v452 = vmax.f32 %v444, %v451
        %v453 = vrot.slane %v452, 2
        %v454 = vmax.f32 %v452, %v453
        %v455 = vrot.slane %v454, 1
        %v456 = vmax.f32 %v454, %v455
        %v457 = vsub.f32 %v442, %v450
        %v458 = vsub.f32 %v444, %v456
        %v459 = vmul.f32 %v457, 1.442695
        %v460 = vpow.pop %v459
        %v461 = vmul.f32 %v458, 1.442695
        %v462 = vpow.pop %v461
        %v463 = vrot.slane %v460, 4
        %v464 = vadd.f32 %v460, %v463
        %v465 = vrot.slane %v464, 2
        %v466 = vadd.f32 %v464, %v465
        %v467 = vrot.slane %v466, 1
        %v468 = vadd.f32 %v466, %v467
        %v469 = vrot.slane %v462, 4
        %v470 = vadd.f32 %v462, %v469
        %v471 = vrot.slane %v470, 2
        %v472 = vadd.f32 %v470, %v471
        %v473 = vrot.slane %v472, 1
        %v474 = vadd.f32 %v472, %v473
        %v475 = vmul.f32 %v460, %v193
        %v476 = vmul.f32 %v462, %v194
        %v477 = vsel %vm220, %v475, 0.0
        %v478 = vrot.slane %v477, 4
        %v479 = vadd.f32 %v477, %v478
        %v480 = vrot.slane %v479, 2
        %v481 = vadd.f32 %v479, %v480
        %v482 = vrot.slane %v481, 1
        %v483 = vadd.f32 %v481, %v482
        %v484 = vsel %vm220, %v476, 0.0
        %v485 = vrot.slane %v484, 4
        %v486 = vadd.f32 %v484, %v485
        %v487 = vrot.slane %v486, 2
        %v488 = vadd.f32 %v486, %v487
        %v489 = vrot.slane %v488, 1
        %v490 = vadd.f32 %v488, %v489
        %v491 = vrcp.pop %v468
        %v492 = vrcp.pop %v474
        %v493 = vmul.f32 %v483, %v491
        %v494 = vmul.f32 %v490, %v492
        %vm497 = vcmask 1041409
        %v498 = vsel %vm497, %v494, %v493
        %499 = vrot.lane.b32.xlu0 %v498, 16
        %v500 = vpop.permute.xlu0 %499
        %vm502 = vcmask 130048
        %v503 = vsel %vm502, %v291, %v500
        %v504 = vld [vmem:[#allocation7 + $0xa0] sm:$0xff]
        %v505 = vld [vmem:[#allocation7 + $0xa8] sm:$0xff]
        %v506 = vld [vmem:[#allocation7 + $0xb0] sm:$0xff]
        %v507 = vld [vmem:[#allocation7 + $0xb8] sm:$0xff]
        %v508 = vld [vmem:[#allocation7 + $0xc0] sm:$0xff]
        %v509 = vld [vmem:[#allocation7 + $0xc8] sm:$0xff]
        %v510 = vld [vmem:[#allocation7 + $0xd0] sm:$0xff]
        %v511 = vld [vmem:[#allocation7 + $0xd8] sm:$0xff]
        %v512 = vld [vmem:[#allocation7 + $0xe0] sm:$0xff]
        %v513 = vld [vmem:[#allocation7 + $0xe8] sm:$0xff]
        %v514 = vld [vmem:[#allocation7 + $0xf0] sm:$0xff]
        %v515 = vld [vmem:[#allocation7 + $0xf8] sm:$0xff]
        %v516 = vld [vmem:[#allocation7 + $0x100] sm:$0xff]
        %v517 = vld [vmem:[#allocation7 + $0x108] sm:$0xff]
        %v518 = vld [vmem:[#allocation7 + $0x1c2] sm:$0x1]
        %520 = vrot.lane.b32.xlu0 %v191, 80
        %v521 = vpop.permute.xlu0 %520
        %vm523 = vcmask 654336
        %v524 = vsel %vm523, %v503, %v521
        %v525 = vlaneseq
        %v526 = vshrl.u32 %v525, 7
        %v527 = vsub.s32 0, %v526
        %v528 = vrot.slane %v518, %v527
        %vm529 = vcmask 916480
        %v531 = vsel %vm529, %v524, 0
        %533 = vmatprep.subr.mxu0 0.0
        %534 = vmatpush1.msra.mxu0 0.0
        %535 = vmatprep.subr.mxu0 0.0
        %536 = vmatpush1.msra.mxu0 0.0
        %537 = vmatprep.subr.mxu0 0.0
        %538 = vmatpush1.msra.mxu0 %v517
        %539 = vmatprep.subr.mxu0 0.0
        %540 = vmatpush1.msra.mxu0 %v516
        %541 = vmatprep.subr.mxu0 0.0
        %542 = vmatpush1.msra.mxu0 %v515
        %543 = vmatprep.subr.mxu0 0.0
        %544 = vmatpush1.msra.mxu0 %v514
        %545 = vmatprep.subr.mxu0 0.0
        %546 = vmatpush1.msra.mxu0 %v513
        %547 = vmatprep.subr.mxu0 0.0
        %548 = vmatpush1.msra.mxu0 %v512
        %549 = vmatprep.subr.mxu0 0.0
        %550 = vmatpush1.msra.mxu0 %v511
        %551 = vmatprep.subr.mxu0 0.0
        %552 = vmatpush1.msra.mxu0 %v510
        %553 = vmatprep.subr.mxu0 0.0
        %554 = vmatpush1.msra.mxu0 %v509
        %555 = vmatprep.subr.mxu0 0.0
        %556 = vmatpush1.msra.mxu0 %v508
        %557 = vmatprep.subr.mxu0 0.0
        %558 = vmatpush1.msra.mxu0 %v507
        %559 = vmatprep.subr.mxu0 0.0
        %560 = vmatpush1.msra.mxu0 %v506
        %561 = vmatprep.subr.mxu0 0.0
        %562 = vmatpush1.msra.mxu0 %v505
        %563 = vmatprep.subr.mxu0 0.0
        %564 = vmatpush1.msra.mxu0 %v504
        %565 = vmatprep.subr.mxu0 0.0
        %566 = vmatpush2.msra.mxu0 0.0
        %567 = vmatprep.subr.mxu0 0.0
        %568 = vmatpush2.msra.mxu0 0.0
        %569 = vmatprep.subr.mxu0 0.0
        %570 = vmatpush2.msra.mxu0 0.0
        %571 = vmatprep.subr.mxu0 0.0
        %572 = vmatpush2.msra.mxu0 0.0
        %573 = vmatprep.subr.mxu0 0.0
        %574 = vmatpush2.msra.mxu0 0.0
        %575 = vmatprep.subr.mxu0 0.0
        %576 = vmatpush2.msra.mxu0 0.0
        %577 = vmatprep.subr.mxu0 0.0
        %578 = vmatpush2.msra.mxu0 0.0
        %579 = vmatprep.subr.mxu0 0.0
        %580 = vmatpush2.msra.mxu0 0.0
        %581 = vmatprep.subr.mxu0 0.0
        %582 = vmatpush2.msra.mxu0 0.0
        %583 = vmatprep.subr.mxu0 0.0
        %584 = vmatpush2.msra.mxu0 0.0
        %585 = vmatprep.subr.mxu0 0.0
        %586 = vmatpush2.msra.mxu0 0.0
        %587 = vmatprep.subr.mxu0 0.0
        %588 = vmatpush2.msra.mxu0 0.0
        %589 = vmatprep.subr.mxu0 0.0
        %590 = vmatpush2.msra.mxu0 0.0
        %591 = vmatprep.subr.mxu0 0.0
        %592 = vmatpush2.msra.mxu0 0.0
        %593 = vmatprep.subr.mxu0 0.0
        %594 = vmatpush2.msra.mxu0 0.0
        %595 = vmatprep.subr.mxu0 0.0
        %596 = vmatpush2.msra.mxu0 0.0
        %597 = vmatprep.mubr.f32.mxu0 0.0
        %598 = vmatmul.mubr.f32.gmra.mxu0 %v531
        %v599 = vpop.f32.mrf.mxu0
        %v600 = vadd.f32 %v528, %v599
        %v601 = vpop.f32.mrf.mxu0
        %602 = vdwg.mxu0
        %v603 = vxor.u32 %v600, 2147483648
        %v604 = vmul.f32 %v603, 1.442695
        %v605 = vpow.pop %v604
        %v606 = vadd.f32 %v605, 1.0
        %v607 = vrcp.pop %v606
        %v608 = vmul.f32 1.0, %v607
        %610 = vrot.lane.b32.xlu0 %v600, 32
        %v611 = vpop.permute.xlu0 %610
        %v613 = vmul.f32 %v608, %v611
        %615 = vrot.lane.b32.xlu0 %v613, 64
        %v616 = vpop.permute.xlu0 %615
        %v618 = vadd.f32 %v600, %v616
        %v619 = vtanh.pop %v618
        %v620 = vsub.f32 1.0, %v608
        %622 = vrot.lane.b32.xlu0 %v619, 96
        %v623 = vpop.permute.xlu0 %622
        %v625 = vmul.f32 %v620, %v623
        %626 = vrot.lane.b32.xlu0 %v191, 32
        %v627 = vpop.permute.xlu0 %626
        %v629 = vmul.f32 %v608, %v627
        %v630 = vadd.f32 %v625, %v629
        %v631 = vld [vmem:[#allocation7 + $0x110] sm:$0xff]
        %v632 = vld [vmem:[#allocation7 + $0x118] sm:$0xff]
        %v633 = vld [vmem:[#allocation7 + $0x120] sm:$0xff]
        %v634 = vld [vmem:[#allocation7 + $0x128] sm:$0xff]
        %v635 = vld [vmem:[#allocation7 + $0x130] sm:$0xff]
        %v636 = vld [vmem:[#allocation7 + $0x138] sm:$0xff]
        %v637 = vld [vmem:[#allocation7 + $0x140] sm:$0xff]
        %v638 = vld [vmem:[#allocation7 + $0x148] sm:$0xff]
        %v639 = vld [vmem:[#allocation7 + $0x1c3] sm:$0x1]
        %641 = vrot.lane.b32.xlu0 %v630, 96
        %v642 = vpop.permute.xlu0 %641
        %644 = vrot.lane.b32.xlu0 %v192, 32
        %v645 = vpop.permute.xlu0 %644
        %vm647 = vcmask 261120
        %v648 = vsel %vm647, %v642, %v645
        %v649 = vlaneseq
        %v650 = vshrl.u32 %v649, 7
        %v651 = vsub.s32 0, %v650
        %v652 = vrot.slane %v639, %v651
        %v654 = vsel %vm220, %v648, 0
        %656 = vmatprep.subr.mxu0 0.0
        %657 = vmatpush1.msra.mxu0 0.0
        %658 = vmatprep.subr.mxu0 0.0
        %659 = vmatpush1.msra.mxu0 0.0
        %660 = vmatprep.subr.mxu0 0.0
        %661 = vmatpush1.msra.mxu0 0.0
        %662 = vmatprep.subr.mxu0 0.0
        %663 = vmatpush1.msra.mxu0 0.0
        %664 = vmatprep.subr.mxu0 0.0
        %665 = vmatpush1.msra.mxu0 0.0
        %666 = vmatprep.subr.mxu0 0.0
        %667 = vmatpush1.msra.mxu0 0.0
        %668 = vmatprep.subr.mxu0 0.0
        %669 = vmatpush1.msra.mxu0 0.0
        %670 = vmatprep.subr.mxu0 0.0
        %671 = vmatpush1.msra.mxu0 0.0
        %672 = vmatprep.subr.mxu0 0.0
        %673 = vmatpush1.msra.mxu0 %v638
        %674 = vmatprep.subr.mxu0 0.0
        %675 = vmatpush1.msra.mxu0 %v637
        %676 = vmatprep.subr.mxu0 0.0
        %677 = vmatpush1.msra.mxu0 %v636
        %678 = vmatprep.subr.mxu0 0.0
        %679 = vmatpush1.msra.mxu0 %v635
        %680 = vmatprep.subr.mxu0 0.0
        %681 = vmatpush1.msra.mxu0 %v634
        %682 = vmatprep.subr.mxu0 0.0
        %683 = vmatpush1.msra.mxu0 %v633
        %684 = vmatprep.subr.mxu0 0.0
        %685 = vmatpush1.msra.mxu0 %v632
        %686 = vmatprep.subr.mxu0 0.0
        %687 = vmatpush1.msra.mxu0 %v631
        %688 = vmatprep.subr.mxu0 0.0
        %689 = vmatpush2.msra.mxu0 0.0
        %690 = vmatprep.subr.mxu0 0.0
        %691 = vmatpush2.msra.mxu0 0.0
        %692 = vmatprep.subr.mxu0 0.0
        %693 = vmatpush2.msra.mxu0 0.0
        %694 = vmatprep.subr.mxu0 0.0
        %695 = vmatpush2.msra.mxu0 0.0
        %696 = vmatprep.subr.mxu0 0.0
        %697 = vmatpush2.msra.mxu0 0.0
        %698 = vmatprep.subr.mxu0 0.0
        %699 = vmatpush2.msra.mxu0 0.0
        %700 = vmatprep.subr.mxu0 0.0
        %701 = vmatpush2.msra.mxu0 0.0
        %702 = vmatprep.subr.mxu0 0.0
        %703 = vmatpush2.msra.mxu0 0.0
        %704 = vmatprep.subr.mxu0 0.0
        %705 = vmatpush2.msra.mxu0 0.0
        %706 = vmatprep.subr.mxu0 0.0
        %707 = vmatpush2.msra.mxu0 0.0
        %708 = vmatprep.subr.mxu0 0.0
        %709 = vmatpush2.msra.mxu0 0.0
        %710 = vmatprep.subr.mxu0 0.0
        %711 = vmatpush2.msra.mxu0 0.0
        %712 = vmatprep.subr.mxu0 0.0
        %713 = vmatpush2.msra.mxu0 0.0
        %714 = vmatprep.subr.mxu0 0.0
        %715 = vmatpush2.msra.mxu0 0.0
        %716 = vmatprep.subr.mxu0 0.0
        %717 = vmatpush2.msra.mxu0 0.0
        %718 = vmatprep.subr.mxu0 0.0
        %719 = vmatpush2.msra.mxu0 0.0
        %720 = vmatprep.mubr.f32.mxu0 0.0
        %721 = vmatmul.mubr.f32.gmra.mxu0 %v654
        %v722 = vpop.f32.mrf.mxu0
        %v723 = vadd.f32 %v652, %v722
        %v724 = vpop.f32.mrf.mxu0
        %725 = vdwg.mxu0
        %v726 = vxor.u32 %v723, 2147483648
        %v727 = vmul.f32 %v726, 1.442695
        %v728 = vpow.pop %v727
        %v729 = vadd.f32 %v728, 1.0
        %v730 = vrcp.pop %v729
        %v731 = vmul.f32 1.0, %v730
        %733 = vrot.lane.b32.xlu0 %v723, 32
        %v734 = vpop.permute.xlu0 %733
        %v736 = vmul.f32 %v731, %v734
        %738 = vrot.lane.b32.xlu0 %v736, 64
        %v739 = vpop.permute.xlu0 %738
        %v741 = vadd.f32 %v723, %v739
        %v742 = vtanh.pop %v741
        %v743 = vsub.f32 1.0, %v731
        %745 = vrot.lane.b32.xlu0 %v742, 96
        %v746 = vpop.permute.xlu0 %745
        %v748 = vmul.f32 %v743, %v746
        %v749 = vmul.f32 %v731, %v645
        %v750 = vadd.f32 %v748, %v749
        %v751 = vld [vmem:[#allocation7 + $0x150] sm:$0xff]
        %v752 = vld [vmem:[#allocation7 + $0x158] sm:$0xff]
        %v753 = vld [vmem:[#allocation7 + $0x160] sm:$0xff]
        %v754 = vld [vmem:[#allocation7 + $0x168] sm:$0xff]
        %v755 = vld [vmem:[#allocation7 + $0x170] sm:$0xff]
        %v756 = vld [vmem:[#allocation7 + $0x178] sm:$0xff]
        %v757 = vld [vmem:[#allocation7 + $0x180] sm:$0xff]
        %v758 = vld [vmem:[#allocation7 + $0x188] sm:$0xff]
        %v759 = vld [vmem:[#allocation7 + $0x190] sm:$0xff]
        %v760 = vld [vmem:[#allocation7 + $0x198] sm:$0xff]
        %v761 = vld [vmem:[#allocation7 + $0x1a0] sm:$0xff]
        %v762 = vld [vmem:[#allocation7 + $0x1a8] sm:$0xff]
        %v763 = vld [vmem:[#allocation7 + $0x1b0] sm:$0xff]
        %v764 = vld [vmem:[#allocation7 + $0x1b8] sm:$0xff]
        %v765 = vld [vmem:[#allocation7 + $0x1c4] sm:$0x1]
        %767 = vrot.lane.b32.xlu0 %v750, 96
        %v768 = vpop.permute.xlu0 %767
        %770 = vrot.lane.b32.xlu0 %v498, 32
        %v771 = vpop.permute.xlu0 %770
        %774 = vrot.lane.b32.xlu0 %v291, 96
        %v775 = vpop.permute.xlu0 %774
        %v777 = vsel %vm647, %v768, %v771
        %v778 = vsel %vm351, %v777, %v775
        %v779 = vlaneseq
        %v780 = vshrl.u32 %v779, 7
        %v781 = vsub.s32 0, %v780
        %v782 = vrot.slane %v765, %v781
        %v784 = vsel %vm529, %v778, 0
        %786 = vmatprep.subr.mxu0 0.0
        %787 = vmatpush1.msra.mxu0 0.0
        %788 = vmatprep.subr.mxu0 0.0
        %789 = vmatpush1.msra.mxu0 0.0
        %790 = vmatprep.subr.mxu0 0.0
        %791 = vmatpush1.msra.mxu0 %v764
        %792 = vmatprep.subr.mxu0 0.0
        %793 = vmatpush1.msra.mxu0 %v763
        %794 = vmatprep.subr.mxu0 0.0
        %795 = vmatpush1.msra.mxu0 %v762
        %796 = vmatprep.subr.mxu0 0.0
        %797 = vmatpush1.msra.mxu0 %v761
        %798 = vmatprep.subr.mxu0 0.0
        %799 = vmatpush1.msra.mxu0 %v760
        %800 = vmatprep.subr.mxu0 0.0
        %801 = vmatpush1.msra.mxu0 %v759
        %802 = vmatprep.subr.mxu0 0.0
        %803 = vmatpush1.msra.mxu0 %v758
        %804 = vmatprep.subr.mxu0 0.0
        %805 = vmatpush1.msra.mxu0 %v757
        %806 = vmatprep.subr.mxu0 0.0
        %807 = vmatpush1.msra.mxu0 %v756
        %808 = vmatprep.subr.mxu0 0.0
        %809 = vmatpush1.msra.mxu0 %v755
        %810 = vmatprep.subr.mxu0 0.0
        %811 = vmatpush1.msra.mxu0 %v754
        %812 = vmatprep.subr.mxu0 0.0
        %813 = vmatpush1.msra.mxu0 %v753
        %814 = vmatprep.subr.mxu0 0.0
        %815 = vmatpush1.msra.mxu0 %v752
        %816 = vmatprep.subr.mxu0 0.0
        %817 = vmatpush1.msra.mxu0 %v751
        %818 = vmatprep.subr.mxu0 0.0
        %819 = vmatpush2.msra.mxu0 0.0
        %820 = vmatprep.subr.mxu0 0.0
        %821 = vmatpush2.msra.mxu0 0.0
        %822 = vmatprep.subr.mxu0 0.0
        %823 = vmatpush2.msra.mxu0 0.0
        %824 = vmatprep.subr.mxu0 0.0
        %825 = vmatpush2.msra.mxu0 0.0
        %826 = vmatprep.subr.mxu0 0.0
        %827 = vmatpush2.msra.mxu0 0.0
        %828 = vmatprep.subr.mxu0 0.0
        %829 = vmatpush2.msra.mxu0 0.0
        %830 = vmatprep.subr.mxu0 0.0
        %831 = vmatpush2.msra.mxu0 0.0
        %832 = vmatprep.subr.mxu0 0.0
        %833 = vmatpush2.msra.mxu0 0.0
        %834 = vmatprep.subr.mxu0 0.0
        %835 = vmatpush2.msra.mxu0 0.0
        %836 = vmatprep.subr.mxu0 0.0
        %837 = vmatpush2.msra.mxu0 0.0
        %838 = vmatprep.subr.mxu0 0.0
        %839 = vmatpush2.msra.mxu0 0.0
        %840 = vmatprep.subr.mxu0 0.0
        %841 = vmatpush2.msra.mxu0 0.0
        %842 = vmatprep.subr.mxu0 0.0
        %843 = vmatpush2.msra.mxu0 0.0
        %844 = vmatprep.subr.mxu0 0.0
        %845 = vmatpush2.msra.mxu0 0.0
        %846 = vmatprep.subr.mxu0 0.0
        %847 = vmatpush2.msra.mxu0 0.0
        %848 = vmatprep.subr.mxu0 0.0
        %849 = vmatpush2.msra.mxu0 0.0
        %850 = vmatprep.mubr.f32.mxu0 0.0
        %851 = vmatmul.mubr.f32.gmra.mxu0 %v784
        %v852 = vpop.f32.mrf.mxu0
        %v853 = vadd.f32 %v782, %v852
        %v854 = vpop.f32.mrf.mxu0
        %855 = vdwg.mxu0
        %v856 = vrot.slane %v750, 6
        %vm858 = vcmask 1041408
        %v859 = vsel %vm858, %v630, %v856
        %861 = vrot.lane.b32.xlu0 %v859, 96
        %v862 = vpop.permute.xlu0 %861
        %vm864 = vcmask 257024
        %865 = vst.msk [vmem:[#allocation2] sm:$0xf] %vm864, %v862
        %v866 = vsel %vm647, %v642, 0.0
        %v867 = vsel %vm647, %v768, 0.0
        %v869 = vrot.slane %v866, 6
        %v872 = vrot.slane %v867, 4
        %v874 = vsel %vm858, %v853, %v869
        %vm875 = vcmask 1043456
        %v876 = vsel %vm875, %v874, %v872
        %vm877 = vcmask 1045504
        %v878 = vsel %vm877, %v876, 0.0
        %879 = vst [vmem:[%s183] sm:$0xff] %v878
        %p880 = scmp.lt.s32.totalorder %s23, 5
        %s881 = scalar_select %p880, %s23, 5
        %s882 = smul.addr %s881, 8
        %s883 = scalar_lea.vmem %s4, %s882
        // Predicated region
        $region45: #{_decode_impl.1} parent=31 // pred_check
          %p884 = pneg %p104
        $region46: #{_decode_impl.1} parent=31 // pred_check_branch
          %886 = sbr.rel (%p884) target = $region48
        $region47: #{_decode_impl.1} parent=31 // pred_region
          _
        $region48: #{_decode_impl.1} parent=31 // pred_fallthru
          _
      $region32: #{_decode_impl.1} parent=5 // pred_fallthru
        _
      %p887 = scmp.le.s32.totalorder 2, %s18
      // Predicated region
      $region49: #{_decode_impl.1} parent=5 // pred_check
        %p888 = pneg %p887
      $region50: #{_decode_impl.1} parent=5 // pred_check_branch
        %890 = sbr.rel (%p888) target = $region52
      $region51: #{_decode_impl.1} parent=5 // pred_region
        %s891 = ssub.s32 %s18, 2
        // Predicated region
        $region53: #{_decode_impl.1} parent=51 // pred_check
          %p892 = pneg %p110
        $region54: #{_decode_impl.1} parent=51 // pred_check_branch
          %894 = sbr.rel (%p892) target = $region56
        $region55: #{_decode_impl.1} parent=51 // pred_region
          %p895 = scmp.lt.s32.totalorder %s24, 5
          %s896 = scalar_select %p895, %s24, 5
          %s897 = smul.addr %s896, 8
          %s898 = scalar_lea.vmem %s4, %s897
        $region56: #{_decode_impl.1} parent=51 // pred_fallthru
          _
      $region52: #{_decode_impl.1} parent=5 // pred_fallthru
        _
    $region6: #{_decode_impl.1} parent=1 // loop_footer
      %s22 = sadd.s32 1, %s18
    $region7: #{_decode_impl.1} parent=1 // loop_footer_branch
      %17 = sbr.rel target = $region3
    $region8: #{_decode_impl.1} parent=1 // loop_exit
      _
    %899 = vsyncpa [#allocation6], 1
    %s900 = scalar_lea.sflag [#allocation6], 1
    %901 = vsyncpa %s900, 1
    %902 = vsyncpa [#allocation8], 1

</llo_original>
